<compile_context>
chip_gen: v6e
topology: v6e:2x2x1
jax: 0.10.0
libtpu: 0.0.40
codegen_flags: <defaults>
</compile_context>

<pallas_src>
import functools

import jax
import jax.numpy as jnp
from jax.experimental import pallas as pl
from jax.experimental.pallas import tpu as pltpu

SCALE_BOUND = 0.11
LIKELIHOOD_BOUND = 1e-9
_LANES = 128
_SUBLANES = 8
_MAX_BLOCK_ROWS = 1024      # (1024,128) f32 tile = 512 KiB; 5 arrays x double-buffer = 5 MiB
_INV_SQRT2 = 0.7071067811865476


def _erfc_core(z):
    # z >= 0. Numerical Recipes rational approximation (abs err < 1.2e-7,
    # float32-accurate). Uses only exp/mul/add so it always lowers on Mosaic.
    t = 1.0 / (1.0 + 0.5 * z)
    poly = (-1.26551223 + t * (1.00002368 + t * (0.37409196 + t * (0.09678418 +
            t * (-0.18628806 + t * (0.27886807 + t * (-1.13520398 + t * (1.48851587 +
            t * (-0.82215223 + t * 0.17087277)))))))))
    return t * jnp.exp(-z * z + poly)


def _erfc(x):
    z = jnp.abs(x)
    ans = _erfc_core(z)
    return jnp.where(x >= 0.0, ans, 2.0 - ans)


def _erfc_nonneg(x):
    # Caller guarantees x >= 0: skip the abs and the final select.
    return _erfc_core(x)


def _likelihood(d, s, scale_bound, likelihood_bound):
    s = jnp.maximum(s, scale_bound)                    # lower_bound_scale
    v = jnp.abs(d)
    inv = pl.reciprocal(s, approx=True) * _INV_SQRT2   # EUP recip, fold 1/sqrt(2)
    upper = 0.5 * _erfc((v - 0.5) * inv)               # arg can be negative
    lower = 0.5 * _erfc_nonneg((v + 0.5) * inv)        # arg always >= 0
    return jnp.maximum(upper - lower, likelihood_bound)  # likelihood_lower_bound


def _gc_kernel_means(x_ref, s_ref, m_ref, out_ref, lk_ref, *,
                     scale_bound, likelihood_bound):
    x = x_ref[...].astype(jnp.float32)
    s = s_ref[...].astype(jnp.float32)
    m = m_ref[...].astype(jnp.float32)
    d = jnp.round(x - m)                               # shared rounded delta
    out_ref[...] = (d + m).astype(out_ref.dtype)       # quantize (inference, delta=1)
    lk_ref[...] = _likelihood(d, s, scale_bound, likelihood_bound)


def _gc_kernel_nomeans(x_ref, s_ref, out_ref, lk_ref, *,
                       scale_bound, likelihood_bound):
    x = x_ref[...].astype(jnp.float32)
    s = s_ref[...].astype(jnp.float32)
    d = jnp.round(x)
    out_ref[...] = d.astype(out_ref.dtype)
    lk_ref[...] = _likelihood(d, s, scale_bound, likelihood_bound)


def gaussian_conditional_forward(inputs, scales, means=None,
                                 scale_bound=SCALE_BOUND,
                                 likelihood_bound=LIKELIHOOD_BOUND):
    """Returns (outputs, likelihood); outputs has the dtype/shape of `inputs`,
    likelihood is float32 with the same shape."""
    orig_shape = inputs.shape
    out_dtype = inputs.dtype
    n = int(inputs.size)

    # Lane-dense (rows, 128) slab. rows is a multiple of the sublane count (8);
    # block_rows is as large as possible (<= _MAX_BLOCK_ROWS) so grid-step
    # overhead is amortized, and rows is padded up to a multiple of block_rows.
    rows_min = -(-n // _LANES)
    rows_min = ((rows_min + _SUBLANES - 1) // _SUBLANES) * _SUBLANES
    block_rows = min(_MAX_BLOCK_ROWS, rows_min)
    rows = ((rows_min + block_rows - 1) // block_rows) * block_rows
    padded = rows * _LANES

    def prep(a):
        flat = a.reshape(-1)                 # native dtype; upcast happens in-kernel
        if padded != n:                      # pad only when actually needed
            flat = jnp.pad(flat, (0, padded - n))
        return flat.reshape(rows, _LANES)

    operands = [prep(inputs), prep(scales)]
    if means is not None:
        operands.append(prep(means))
        kernel = functools.partial(_gc_kernel_means,
                                   scale_bound=float(scale_bound),
                                   likelihood_bound=float(likelihood_bound))
    else:
        kernel = functools.partial(_gc_kernel_nomeans,
                                   scale_bound=float(scale_bound),
                                   likelihood_bound=float(likelihood_bound))

    grid = (rows // block_rows,)
    spec = pl.BlockSpec((block_rows, _LANES), lambda i: (i, 0))

    n_arrays = len(operands) + 2
    cost = pl.CostEstimate(flops=60 * padded,
                           transcendentals=2 * padded,
                           bytes_accessed=4 * n_arrays * padded)

    outputs, likelihood = pl.pallas_call(
        kernel,
        grid=grid,
        in_specs=[spec] * len(operands),
        out_specs=[spec, spec],
        out_shape=[jax.ShapeDtypeStruct((rows, _LANES), out_dtype),
                   jax.ShapeDtypeStruct((rows, _LANES), jnp.float32)],
        compiler_params=pltpu.CompilerParams(
            dimension_semantics=("parallel",)),
        cost_estimate=cost,
    )(*operands)

    if padded != n:
        outputs = outputs.reshape(-1)[:n]
        likelihood = likelihood.reshape(-1)[:n]
    return outputs.reshape(orig_shape), likelihood.reshape(orig_shape)


if __name__ == "__main__":
    key = jax.random.PRNGKey(0)
    k1, k2, k3 = jax.random.split(key, 3)

    B, C, H, W = 2, 4, 16, 16  # NCHW
    inputs = jax.random.normal(k1, (B, C, H, W), dtype=jnp.float32) * 3.0
    scales = jax.random.uniform(k2, (B, C, H, W), dtype=jnp.float32,
                                minval=0.01, maxval=2.0)
    means = jax.random.normal(k3, (B, C, H, W), dtype=jnp.float32) * 0.5

    outputs, likelihood = gaussian_conditional_forward(inputs, scales, means)
    jax.block_until_ready((outputs, likelihood))

    # means=None path (dedicated 2-input kernel, no synthetic zero-means array)
    outputs2, likelihood2 = gaussian_conditional_forward(inputs, scales, None)
    jax.block_until_ready((outputs2, likelihood2))

    # a non-tile-multiple shape exercises the padded-tail path
    outputs3, likelihood3 = gaussian_conditional_forward(
        inputs[:, :3, :13, :11], scales[:, :3, :13, :11], means[:, :3, :13, :11])
    jax.block_until_ready((outputs3, likelihood3))

    # pure-JAX reference (exact erfc) for a sanity check
    def ref(x, s, m):
        if m is not None:
            out = jnp.round(x - m) + m
            v = jnp.abs(out - m)
        else:
            out = jnp.round(x)
            v = jnp.abs(out)
        s = jnp.maximum(s, SCALE_BOUND)
        c = 2.0 ** -0.5
        upper = 0.5 * jax.scipy.special.erfc((v - 0.5) * c / s)
        lower = 0.5 * jax.scipy.special.erfc((v + 0.5) * c / s)
        return out, jnp.maximum(upper - lower, LIKELIHOOD_BOUND)

    r_out, r_lk = ref(inputs, scales, means)
    assert outputs.shape == (B, C, H, W) and likelihood.shape == (B, C, H, W)
    assert bool(jnp.allclose(outputs, r_out, atol=1e-6, rtol=0.0))
    # erfc polynomial (~1.2e-7 abs) + approx reciprocal -> loose tolerance
    assert bool(jnp.max(jnp.abs(likelihood - r_lk)) < 5e-3)
    assert bool(jnp.all(likelihood >= LIKELIHOOD_BOUND))
    assert bool(jnp.all(likelihood2 >= LIKELIHOOD_BOUND))
    assert bool(jnp.all(likelihood3 >= LIKELIHOOD_BOUND))
    print("KERNEL_OK")
</pallas_src>

<mosaic_0001>
module attributes {stable_mosaic.version = 11 : i64} {
  func.func @_gc_kernel_means(%arg0: i32, %arg1: memref<16x128xf32, #tpu.memory_space<vmem>>, %arg2: memref<16x128xf32, #tpu.memory_space<vmem>>, %arg3: memref<16x128xf32, #tpu.memory_space<vmem>>, %arg4: memref<16x128xf32, #tpu.memory_space<vmem>>, %arg5: memref<16x128xf32, #tpu.memory_space<vmem>>) attributes {dimension_semantics = [#tpu.dimension_semantics<parallel>], iteration_bounds = array<i64: 1>, scalar_prefetch = 0 : i64, scratch_operands = 0 : i64, tpu.core_type = #tpu.core_type<tc>, window_params = [{transform_indices = @transform_0, window_bounds = array<i64: 16, 128>}, {transform_indices = @transform_1, window_bounds = array<i64: 16, 128>}, {transform_indices = @transform_2, window_bounds = array<i64: 16, 128>}, {transform_indices = @transform_3, window_bounds = array<i64: 16, 128>}, {transform_indices = @transform_4, window_bounds = array<i64: 16, 128>}]} {
    %c0 = arith.constant 0 : index
    %c0_0 = arith.constant 0 : index
    %0 = vector.load %arg1[%c0, %c0_0] : memref<16x128xf32, #tpu.memory_space<vmem>>, vector<16x128xf32>
    %c0_1 = arith.constant 0 : index
    %c0_2 = arith.constant 0 : index
    %1 = vector.load %arg2[%c0_1, %c0_2] : memref<16x128xf32, #tpu.memory_space<vmem>>, vector<16x128xf32>
    %c0_3 = arith.constant 0 : index
    %c0_4 = arith.constant 0 : index
    %2 = vector.load %arg3[%c0_3, %c0_4] : memref<16x128xf32, #tpu.memory_space<vmem>>, vector<16x128xf32>
    %3 = arith.subf %0, %2 : vector<16x128xf32>
    %4 = math.roundeven %3 : vector<16x128xf32>
    %5 = arith.addf %4, %2 : vector<16x128xf32>
    %c0_5 = arith.constant 0 : index
    %c0_6 = arith.constant 0 : index
    %6 = vector.load %arg4[%c0_5, %c0_6] : memref<16x128xf32, #tpu.memory_space<vmem>>, vector<16x128xf32>
    tpu.vector_store %arg4[%c0_5, %c0_6], %5 {strides = array<i32>} : memref<16x128xf32, #tpu.memory_space<vmem>>, vector<16x128xf32>,
    %cst = arith.constant 1.100000e-01 : f32
    %7 = vector.broadcast %cst : f32 to vector<16x128xf32>
    %8 = arith.maximumf %1, %7 : vector<16x128xf32>
    %9 = math.absf %4 : vector<16x128xf32>
    %10 = tpu.reciprocal %8 {approx = true} : vector<16x128xf32> -> vector<16x128xf32>
    %cst_7 = arith.constant 0.707106769 : f32
    %11 = vector.broadcast %cst_7 : f32 to vector<16x128xf32>
    %12 = arith.mulf %10, %11 : vector<16x128xf32>
    %cst_8 = arith.constant 5.000000e-01 : f32
    %13 = vector.broadcast %cst_8 : f32 to vector<16x128xf32>
    %14 = arith.subf %9, %13 : vector<16x128xf32>
    %15 = arith.mulf %14, %12 : vector<16x128xf32>
    %16 = math.absf %15 : vector<16x128xf32>
    %cst_9 = arith.constant 5.000000e-01 : f32
    %17 = vector.broadcast %cst_9 : f32 to vector<16x128xf32>
    %18 = arith.mulf %17, %16 : vector<16x128xf32>
    %cst_10 = arith.constant 1.000000e+00 : f32
    %19 = vector.broadcast %cst_10 : f32 to vector<16x128xf32>
    %20 = arith.addf %19, %18 : vector<16x128xf32>
    %cst_11 = arith.constant 1.000000e+00 : f32
    %21 = vector.broadcast %cst_11 : f32 to vector<16x128xf32>
    %22 = arith.divf %21, %20 : vector<16x128xf32>
    %cst_12 = arith.constant 0.170872763 : f32
    %23 = vector.broadcast %cst_12 : f32 to vector<16x128xf32>
    %24 = arith.mulf %22, %23 : vector<16x128xf32>
    %cst_13 = arith.constant -0.822152256 : f32
    %25 = vector.broadcast %cst_13 : f32 to vector<16x128xf32>
    %26 = arith.addf %25, %24 : vector<16x128xf32>
    %27 = arith.mulf %22, %26 : vector<16x128xf32>
    %cst_14 = arith.constant 1.48851585 : f32
    %28 = vector.broadcast %cst_14 : f32 to vector<16x128xf32>
    %29 = arith.addf %28, %27 : vector<16x128xf32>
    %30 = arith.mulf %22, %29 : vector<16x128xf32>
    %cst_15 = arith.constant -1.13520396 : f32
    %31 = vector.broadcast %cst_15 : f32 to vector<16x128xf32>
    %32 = arith.addf %31, %30 : vector<16x128xf32>
    %33 = arith.mulf %22, %32 : vector<16x128xf32>
    %cst_16 = arith.constant 0.278868079 : f32
    %34 = vector.broadcast %cst_16 : f32 to vector<16x128xf32>
    %35 = arith.addf %34, %33 : vector<16x128xf32>
    %36 = arith.mulf %22, %35 : vector<16x128xf32>
    %cst_17 = arith.constant -0.186288059 : f32
    %37 = vector.broadcast %cst_17 : f32 to vector<16x128xf32>
    %38 = arith.addf %37, %36 : vector<16x128xf32>
    %39 = arith.mulf %22, %38 : vector<16x128xf32>
    %cst_18 = arith.constant 0.0967841818 : f32
    %40 = vector.broadcast %cst_18 : f32 to vector<16x128xf32>
    %41 = arith.addf %40, %39 : vector<16x128xf32>
    %42 = arith.mulf %22, %41 : vector<16x128xf32>
    %cst_19 = arith.constant 0.374091953 : f32
    %43 = vector.broadcast %cst_19 : f32 to vector<16x128xf32>
    %44 = arith.addf %43, %42 : vector<16x128xf32>
    %45 = arith.mulf %22, %44 : vector<16x128xf32>
    %cst_20 = arith.constant 1.00002372 : f32
    %46 = vector.broadcast %cst_20 : f32 to vector<16x128xf32>
    %47 = arith.addf %46, %45 : vector<16x128xf32>
    %48 = arith.mulf %22, %47 : vector<16x128xf32>
    %cst_21 = arith.constant -1.26551223 : f32
    %49 = vector.broadcast %cst_21 : f32 to vector<16x128xf32>
    %50 = arith.addf %49, %48 : vector<16x128xf32>
    %cst_22 = arith.constant 0.000000e+00 : f32
    %51 = vector.broadcast %cst_22 : f32 to vector<16x128xf32>
    %52 = arith.subf %51, %16 : vector<16x128xf32>
    %53 = arith.mulf %52, %16 : vector<16x128xf32>
    %54 = arith.addf %53, %50 : vector<16x128xf32>
    %55 = math.exp %54 : vector<16x128xf32>
    %56 = arith.mulf %22, %55 : vector<16x128xf32>
    %cst_23 = arith.constant 0.000000e+00 : f32
    %57 = vector.broadcast %cst_23 : f32 to vector<16x128xf32>
    %58 = arith.cmpf oge, %15, %57 : vector<16x128xf32>
    %cst_24 = arith.constant 2.000000e+00 : f32
    %59 = vector.broadcast %cst_24 : f32 to vector<16x128xf32>
    %60 = arith.subf %59, %56 : vector<16x128xf32>
    %61 = arith.select %58, %56, %60 : vector<16x128xi1>, vector<16x128xf32>
    %cst_25 = arith.constant 5.000000e-01 : f32
    %62 = vector.broadcast %cst_25 : f32 to vector<16x128xf32>
    %63 = arith.mulf %62, %61 : vector<16x128xf32>
    %cst_26 = arith.constant 5.000000e-01 : f32
    %64 = vector.broadcast %cst_26 : f32 to vector<16x128xf32>
    %65 = arith.addf %9, %64 : vector<16x128xf32>
    %66 = arith.mulf %65, %12 : vector<16x128xf32>
    %cst_27 = arith.constant 5.000000e-01 : f32
    %67 = vector.broadcast %cst_27 : f32 to vector<16x128xf32>
    %68 = arith.mulf %67, %66 : vector<16x128xf32>
    %cst_28 = arith.constant 1.000000e+00 : f32
    %69 = vector.broadcast %cst_28 : f32 to vector<16x128xf32>
    %70 = arith.addf %69, %68 : vector<16x128xf32>
    %cst_29 = arith.constant 1.000000e+00 : f32
    %71 = vector.broadcast %cst_29 : f32 to vector<16x128xf32>
    %72 = arith.divf %71, %70 : vector<16x128xf32>
    %cst_30 = arith.constant 0.170872763 : f32
    %73 = vector.broadcast %cst_30 : f32 to vector<16x128xf32>
    %74 = arith.mulf %72, %73 : vector<16x128xf32>
    %cst_31 = arith.constant -0.822152256 : f32
    %75 = vector.broadcast %cst_31 : f32 to vector<16x128xf32>
    %76 = arith.addf %75, %74 : vector<16x128xf32>
    %77 = arith.mulf %72, %76 : vector<16x128xf32>
    %cst_32 = arith.constant 1.48851585 : f32
    %78 = vector.broadcast %cst_32 : f32 to vector<16x128xf32>
    %79 = arith.addf %78, %77 : vector<16x128xf32>
    %80 = arith.mulf %72, %79 : vector<16x128xf32>
    %cst_33 = arith.constant -1.13520396 : f32
    %81 = vector.broadcast %cst_33 : f32 to vector<16x128xf32>
    %82 = arith.addf %81, %80 : vector<16x128xf32>
    %83 = arith.mulf %72, %82 : vector<16x128xf32>
    %cst_34 = arith.constant 0.278868079 : f32
    %84 = vector.broadcast %cst_34 : f32 to vector<16x128xf32>
    %85 = arith.addf %84, %83 : vector<16x128xf32>
    %86 = arith.mulf %72, %85 : vector<16x128xf32>
    %cst_35 = arith.constant -0.186288059 : f32
    %87 = vector.broadcast %cst_35 : f32 to vector<16x128xf32>
    %88 = arith.addf %87, %86 : vector<16x128xf32>
    %89 = arith.mulf %72, %88 : vector<16x128xf32>
    %cst_36 = arith.constant 0.0967841818 : f32
    %90 = vector.broadcast %cst_36 : f32 to vector<16x128xf32>
    %91 = arith.addf %90, %89 : vector<16x128xf32>
    %92 = arith.mulf %72, %91 : vector<16x128xf32>
    %cst_37 = arith.constant 0.374091953 : f32
    %93 = vector.broadcast %cst_37 : f32 to vector<16x128xf32>
    %94 = arith.addf %93, %92 : vector<16x128xf32>
    %95 = arith.mulf %72, %94 : vector<16x128xf32>
    %cst_38 = arith.constant 1.00002372 : f32
    %96 = vector.broadcast %cst_38 : f32 to vector<16x128xf32>
    %97 = arith.addf %96, %95 : vector<16x128xf32>
    %98 = arith.mulf %72, %97 : vector<16x128xf32>
    %cst_39 = arith.constant -1.26551223 : f32
    %99 = vector.broadcast %cst_39 : f32 to vector<16x128xf32>
    %100 = arith.addf %99, %98 : vector<16x128xf32>
    %cst_40 = arith.constant 0.000000e+00 : f32
    %101 = vector.broadcast %cst_40 : f32 to vector<16x128xf32>
    %102 = arith.subf %101, %66 : vector<16x128xf32>
    %103 = arith.mulf %102, %66 : vector<16x128xf32>
    %104 = arith.addf %103, %100 : vector<16x128xf32>
    %105 = math.exp %104 : vector<16x128xf32>
    %106 = arith.mulf %72, %105 : vector<16x128xf32>
    %cst_41 = arith.constant 5.000000e-01 : f32
    %107 = vector.broadcast %cst_41 : f32 to vector<16x128xf32>
    %108 = arith.mulf %107, %106 : vector<16x128xf32>
    %109 = arith.subf %63, %108 : vector<16x128xf32>
    %cst_42 = arith.constant 9.99999971E-10 : f32
    %110 = vector.broadcast %cst_42 : f32 to vector<16x128xf32>
    %111 = arith.maximumf %109, %110 : vector<16x128xf32>
    %c0_43 = arith.constant 0 : index
    %c0_44 = arith.constant 0 : index
    %112 = vector.load %arg5[%c0_43, %c0_44] : memref<16x128xf32, #tpu.memory_space<vmem>>, vector<16x128xf32>
    tpu.vector_store %arg5[%c0_43, %c0_44], %111 {strides = array<i32>} : memref<16x128xf32, #tpu.memory_space<vmem>>, vector<16x128xf32>,
    return
  }
  func.func @transform_0(%arg0: i32) -> (i32, i32) {
    %c0_i32 = arith.constant 0 : i32
    %c0_i32_0 = arith.constant 0 : i32
    return %arg0, %c0_i32 : i32, i32
  }
  func.func @transform_1(%arg0: i32) -> (i32, i32) {
    %c0_i32 = arith.constant 0 : i32
    %c0_i32_0 = arith.constant 0 : i32
    return %arg0, %c0_i32 : i32, i32
  }
  func.func @transform_2(%arg0: i32) -> (i32, i32) {
    %c0_i32 = arith.constant 0 : i32
    %c0_i32_0 = arith.constant 0 : i32
    return %arg0, %c0_i32 : i32, i32
  }
  func.func @transform_3(%arg0: i32) -> (i32, i32) {
    %c0_i32 = arith.constant 0 : i32
    %c0_i32_0 = arith.constant 0 : i32
    return %arg0, %c0_i32 : i32, i32
  }
  func.func @transform_4(%arg0: i32) -> (i32, i32) {
    %c0_i32 = arith.constant 0 : i32
    %c0_i32_0 = arith.constant 0 : i32
    return %arg0, %c0_i32 : i32, i32
  }
}

</mosaic_0001>

<llo_original>
// kernel: tpu_custom_call.1
$region0: #{tpu_custom_call.1}
  #allocation0 [shape = 'u32[]', space=smem, size = 0x4, offset = 0x4, fixed_abs, tag = 'smem constant byte address 0x4 - core index']
  #allocation1 [shape = 'u32[144,128]{1,0:T(1,128)}', space=vmem, size = 0x12000, scoped, tag = 'internal scratch']
  %s0 = inlined_call_operand.hbm [shape: f32[16,128], index: 0, kind: input, shape index: {}]
  %s1 = inlined_call_operand.hbm [shape: f32[16,128], index: 1, kind: input, shape index: {}]
  %s2 = inlined_call_operand.hbm [shape: f32[16,128], index: 2, kind: input, shape index: {}]
  %s3 = inlined_call_operand.hbm [shape: f32[16,128], index: 3, kind: output, shape index: {0}]
  %s4 = inlined_call_operand.hbm [shape: f32[16,128], index: 4, kind: output, shape index: {1}]
  %5 = xla_tuple %s3, %s4
  %s6 = sld [smem:[#allocation0]]
  $region42: #{tpu_custom_call.1} parent=0
    _
  %s8 = ssub.s32 1, %s6
  %s9 = scalar_select 0, %s8, %s6
  $region1: #{tpu_custom_call.1} parent=0
    #allocation2 [shape = 'u8[8192]{0}', space=vmem, size = 0x2000, scoped, tag = 'input window, operand 0, single buffered']
    #allocation3 [shape = 's32[1]{0}', space=sflag, size = 0x4, scoped, tag = 'scoped memory for tpu_custom_call.1']
    #allocation4 [shape = 's32[1]{0}', space=sflag, size = 0x4, scoped, tag = 'scoped memory for tpu_custom_call.1']
    #allocation5 [shape = 'u8[8192]{0}', space=vmem, size = 0x2000, scoped, tag = 'input window, operand 1, single buffered']
    #allocation6 [shape = 's32[1]{0}', space=sflag, size = 0x4, scoped, tag = 'scoped memory for tpu_custom_call.1']
    #allocation7 [shape = 'u8[8192]{0}', space=vmem, size = 0x2000, scoped, tag = 'input window, operand 2, single buffered']
    #allocation8 [shape = 'u8[8192]{0}', space=vmem, size = 0x2000, scoped, tag = 'output window, operand 0, single buffered']
    #allocation9 [shape = 'u8[8192]{0}', space=vmem, size = 0x2000, scoped, tag = 'output window, operand 1, single buffered']
    #allocation10 [shape = 's32[1]{0}', space=sflag, size = 0x4, scoped, tag = 'scoped memory for tpu_custom_call.1']
    %10 = vsyncpa [#allocation3], 0
    %11 = vsyncpa [#allocation6], 0
    %12 = vsyncpa [#allocation4], 0
    %13 = vsyncpa [#allocation10], 0
    // Predicated region
    $region2: #{tpu_custom_call.1} parent=1 // pred_check
      _
    $region3: #{tpu_custom_call.1} parent=1 // pred_check_branch
      %15 = sbr.rel (0) target = $region5
    $region4: #{tpu_custom_call.1} parent=1 // pred_region
      %s17 = ssub.s32 256, 256
      %18 = vsyncadd [#allocation3], %s17
      %s19 = sshll.u32 [#allocation2], 4
      %s20 = int_to_ptr.vmem [resolvable:$true] %s19
      %25 = dma.hbm_to_vmem [thread:$0]  %s0, 256, %s20, [#allocation3], 128, 128, 8
    $region5: #{tpu_custom_call.1} parent=1 // pred_fallthru
      _
    // Predicated region
    $region6: #{tpu_custom_call.1} parent=1 // pred_check
      _
    $region7: #{tpu_custom_call.1} parent=1 // pred_check_branch
      %27 = sbr.rel (0) target = $region9
    $region8: #{tpu_custom_call.1} parent=1 // pred_region
      %s29 = ssub.s32 256, 256
      %30 = vsyncadd [#allocation6], %s29
      %s31 = sshll.u32 [#allocation5], 4
      %s32 = int_to_ptr.vmem [resolvable:$true] %s31
      %37 = dma.hbm_to_vmem [thread:$0]  %s1, 256, %s32, [#allocation6], 128, 128, 8
    $region9: #{tpu_custom_call.1} parent=1 // pred_fallthru
      _
    // Predicated region
    $region10: #{tpu_custom_call.1} parent=1 // pred_check
      _
    $region11: #{tpu_custom_call.1} parent=1 // pred_check_branch
      %39 = sbr.rel (0) target = $region13
    $region12: #{tpu_custom_call.1} parent=1 // pred_region
      %s41 = ssub.s32 256, 256
      %42 = vsyncadd [#allocation6], %s41
      %s43 = sshll.u32 [#allocation7], 4
      %s44 = int_to_ptr.vmem [resolvable:$true] %s43
      %49 = dma.hbm_to_vmem [thread:$0]  %s2, 256, %s44, [#allocation6], 128, 128, 8
    $region13: #{tpu_custom_call.1} parent=1 // pred_fallthru
      _
    // Predicated region
    $region14: #{tpu_custom_call.1} parent=1 // pred_check
      _
    $region15: #{tpu_custom_call.1} parent=1 // pred_check_branch
      %51 = sbr.rel (0) target = $region17
    $region16: #{tpu_custom_call.1} parent=1 // pred_region
      %52 = dma.done [#allocation3], 256
    $region17: #{tpu_custom_call.1} parent=1 // pred_fallthru
      _
    // Predicated region
    $region18: #{tpu_custom_call.1} parent=1 // pred_check
      _
    $region19: #{tpu_custom_call.1} parent=1 // pred_check_branch
      %54 = sbr.rel (0) target = $region21
    $region20: #{tpu_custom_call.1} parent=1 // pred_region
      %55 = dma.done [#allocation6], 256
    $region21: #{tpu_custom_call.1} parent=1 // pred_fallthru
      _
    // Predicated region
    $region22: #{tpu_custom_call.1} parent=1 // pred_check
      _
    $region23: #{tpu_custom_call.1} parent=1 // pred_check_branch
      %57 = sbr.rel (0) target = $region25
    $region24: #{tpu_custom_call.1} parent=1 // pred_region
      %58 = dma.done [#allocation6], 256
    $region25: #{tpu_custom_call.1} parent=1 // pred_fallthru
      _
    %v59 = vld [vmem:[#allocation2] sm:$0xff]
    %v60 = vld [vmem:[#allocation2 + $0x8] sm:$0xff]
    %v61 = vld [vmem:[#allocation5] sm:$0xff]
    %v62 = vld [vmem:[#allocation5 + $0x8] sm:$0xff]
    %v63 = vld [vmem:[#allocation7] sm:$0xff]
    %v64 = vld [vmem:[#allocation7 + $0x8] sm:$0xff]
    %v65 = vsub.f32 %v59, %v63
    %v66 = vsub.f32 %v60, %v64
    %v67 = vround.ne.pseudo %v65
    %v68 = vround.ne.pseudo %v66
    %v69 = vadd.f32 %v67, %v63
    %v70 = vadd.f32 %v68, %v64
    %71 = vst [vmem:[#allocation8] sm:$0xff] %v69
    %72 = vst [vmem:[#allocation8 + $0x8] sm:$0xff] %v70
    %v73 = vmax.f32 %v61, 0.11
    %v74 = vmax.f32 %v62, 0.11
    %v75 = vand.u32 2147483647, %v67
    %v76 = vand.u32 2147483647, %v68
    %v77 = vrcp.pop %v73
    %v78 = vrcp.pop %v74
    %v79 = vmul.f32 %v77, 0.70710677
    %v80 = vmul.f32 %v78, 0.70710677
    %v81 = vsub.f32 %v75, 0.5
    %v82 = vsub.f32 %v76, 0.5
    %v83 = vmul.f32 %v81, %v79
    %v84 = vmul.f32 %v82, %v80
    %v85 = vand.u32 2147483647, %v83
    %v86 = vand.u32 2147483647, %v84
    %v87 = vmul.f32 %v85, 0.5
    %v88 = vmul.f32 %v86, 0.5
    %v89 = vadd.f32 %v87, 1.0
    %v90 = vadd.f32 %v88, 1.0
    %v91 = vrcp.pop %v89
    %v92 = vmul.f32 1.0, %v91
    %v93 = vrcp.pop %v90
    %v94 = vmul.f32 1.0, %v93
    %v95 = vmul.f32 %v92, 0.17087276
    %v96 = vmul.f32 %v94, 0.17087276
    %v97 = vadd.f32 %v95, -0.82215226
    %v98 = vadd.f32 %v96, -0.82215226
    %v99 = vmul.f32 %v92, %v97
    %v100 = vmul.f32 %v94, %v98
    %v101 = vadd.f32 %v99, 1.4885159
    %v102 = vadd.f32 %v100, 1.4885159
    %v103 = vmul.f32 %v92, %v101
    %v104 = vmul.f32 %v94, %v102
    %v105 = vadd.f32 %v103, -1.135204
    %v106 = vadd.f32 %v104, -1.135204
    %v107 = vmul.f32 %v92, %v105
    %v108 = vmul.f32 %v94, %v106
    %v109 = vadd.f32 %v107, 0.27886808
    %v110 = vadd.f32 %v108, 0.27886808
    %v111 = vmul.f32 %v92, %v109
    %v112 = vmul.f32 %v94, %v110
    %v113 = vadd.f32 %v111, -0.18628806
    %v114 = vadd.f32 %v112, -0.18628806
    %v115 = vmul.f32 %v92, %v113
    %v116 = vmul.f32 %v94, %v114
    %v117 = vadd.f32 %v115, 0.09678418
    %v118 = vadd.f32 %v116, 0.09678418
    %v119 = vmul.f32 %v92, %v117
    %v120 = vmul.f32 %v94, %v118
    %v121 = vadd.f32 %v119, 0.37409195
    %v122 = vadd.f32 %v120, 0.37409195
    %v123 = vmul.f32 %v92, %v121
    %v124 = vmul.f32 %v94, %v122
    %v125 = vadd.f32 %v123, 1.0000237
    %v126 = vadd.f32 %v124, 1.0000237
    %v127 = vmul.f32 %v92, %v125
    %v128 = vmul.f32 %v94, %v126
    %v129 = vadd.f32 %v127, -1.2655122
    %v130 = vadd.f32 %v128, -1.2655122
    %v131 = vsub.f32 0.0, %v85
    %v132 = vsub.f32 0.0, %v86
    %v133 = vmul.f32 %v131, %v85
    %v134 = vmul.f32 %v132, %v86
    %v135 = vadd.f32 %v133, %v129
    %v136 = vadd.f32 %v134, %v130
    %v137 = vmul.f32 %v135, 1.442695
    %v138 = vpow.pop %v137
    %v139 = vmul.f32 %v136, 1.442695
    %v140 = vpow.pop %v139
    %v141 = vmul.f32 %v92, %v138
    %v142 = vmul.f32 %v94, %v140
    %vm143 = vcmp.ge.f32.partialorder %v83, 0.0
    %vm144 = vcmp.ge.f32.partialorder %v84, 0.0
    %v145 = vsub.f32 2.0, %v141
    %v146 = vsub.f32 2.0, %v142
    %v147 = vsel %vm143, %v141, %v145
    %v148 = vsel %vm144, %v142, %v146
    %v149 = vmul.f32 %v147, 0.5
    %v150 = vmul.f32 %v148, 0.5
    %v151 = vadd.f32 %v75, 0.5
    %v152 = vadd.f32 %v76, 0.5
    %v153 = vmul.f32 %v151, %v79
    %v154 = vmul.f32 %v152, %v80
    %v155 = vmul.f32 %v153, 0.5
    %v156 = vmul.f32 %v154, 0.5
    %v157 = vadd.f32 %v155, 1.0
    %v158 = vadd.f32 %v156, 1.0
    %v159 = vrcp.pop %v157
    %v160 = vmul.f32 1.0, %v159
    %v161 = vrcp.pop %v158
    %v162 = vmul.f32 1.0, %v161
    %v163 = vmul.f32 %v160, 0.17087276
    %v164 = vmul.f32 %v162, 0.17087276
    %v165 = vadd.f32 %v163, -0.82215226
    %v166 = vadd.f32 %v164, -0.82215226
    %v167 = vmul.f32 %v160, %v165
    %v168 = vmul.f32 %v162, %v166
    %v169 = vadd.f32 %v167, 1.4885159
    %v170 = vadd.f32 %v168, 1.4885159
    %v171 = vmul.f32 %v160, %v169
    %v172 = vmul.f32 %v162, %v170
    %v173 = vadd.f32 %v171, -1.135204
    %v174 = vadd.f32 %v172, -1.135204
    %v175 = vmul.f32 %v160, %v173
    %v176 = vmul.f32 %v162, %v174
    %v177 = vadd.f32 %v175, 0.27886808
    %v178 = vadd.f32 %v176, 0.27886808
    %v179 = vmul.f32 %v160, %v177
    %v180 = vmul.f32 %v162, %v178
    %v181 = vadd.f32 %v179, -0.18628806
    %v182 = vadd.f32 %v180, -0.18628806
    %v183 = vmul.f32 %v160, %v181
    %v184 = vmul.f32 %v162, %v182
    %v185 = vadd.f32 %v183, 0.09678418
    %v186 = vadd.f32 %v184, 0.09678418
    %v187 = vmul.f32 %v160, %v185
    %v188 = vmul.f32 %v162, %v186
    %v189 = vadd.f32 %v187, 0.37409195
    %v190 = vadd.f32 %v188, 0.37409195
    %v191 = vmul.f32 %v160, %v189
    %v192 = vmul.f32 %v162, %v190
    %v193 = vadd.f32 %v191, 1.0000237
    %v194 = vadd.f32 %v192, 1.0000237
    %v195 = vmul.f32 %v160, %v193
    %v196 = vmul.f32 %v162, %v194
    %v197 = vadd.f32 %v195, -1.2655122
    %v198 = vadd.f32 %v196, -1.2655122
    %v199 = vsub.f32 0.0, %v153
    %v200 = vsub.f32 0.0, %v154
    %v201 = vmul.f32 %v199, %v153
    %v202 = vmul.f32 %v200, %v154
    %v203 = vadd.f32 %v201, %v197
    %v204 = vadd.f32 %v202, %v198
    %v205 = vmul.f32 %v203, 1.442695
    %v206 = vpow.pop %v205
    %v207 = vmul.f32 %v204, 1.442695
    %v208 = vpow.pop %v207
    %v209 = vmul.f32 %v160, %v206
    %v210 = vmul.f32 %v162, %v208
    %v211 = vmul.f32 %v209, 0.5
    %v212 = vmul.f32 %v210, 0.5
    %v213 = vsub.f32 %v149, %v211
    %v214 = vsub.f32 %v150, %v212
    %v215 = vmax.f32 %v213, 1e-09
    %v216 = vmax.f32 %v214, 1e-09
    %217 = vst [vmem:[#allocation9] sm:$0xff] %v215
    %218 = vst [vmem:[#allocation9 + $0x8] sm:$0xff] %v216
    // Predicated region
    $region26: #{tpu_custom_call.1} parent=1 // pred_check
      _
    $region27: #{tpu_custom_call.1} parent=1 // pred_check_branch
      %220 = sbr.rel (0) target = $region29
    $region28: #{tpu_custom_call.1} parent=1 // pred_region
      %s222 = ssub.s32 256, 256
      %223 = vsyncadd [#allocation4], %s222
      %s224 = sshll.u32 [#allocation8], 4
      %s225 = int_to_ptr.vmem [resolvable:$true] %s224
      %230 = dma.vmem_to_hbm [thread:$0]  %s225, 256, %s3, [#allocation4], 128, 128, 8
    $region29: #{tpu_custom_call.1} parent=1 // pred_fallthru
      _
    // Predicated region
    $region30: #{tpu_custom_call.1} parent=1 // pred_check
      _
    $region31: #{tpu_custom_call.1} parent=1 // pred_check_branch
      %232 = sbr.rel (0) target = $region33
    $region32: #{tpu_custom_call.1} parent=1 // pred_region
      %s234 = ssub.s32 256, 256
      %235 = vsyncadd [#allocation10], %s234
      %s236 = sshll.u32 [#allocation9], 4
      %s237 = int_to_ptr.vmem [resolvable:$true] %s236
      %242 = dma.vmem_to_hbm [thread:$0]  %s237, 256, %s4, [#allocation10], 128, 128, 8
    $region33: #{tpu_custom_call.1} parent=1 // pred_fallthru
      _
    // Predicated region
    $region34: #{tpu_custom_call.1} parent=1 // pred_check
      _
    $region35: #{tpu_custom_call.1} parent=1 // pred_check_branch
      %244 = sbr.rel (0) target = $region37
    $region36: #{tpu_custom_call.1} parent=1 // pred_region
      %245 = dma.done [#allocation4], 256
    $region37: #{tpu_custom_call.1} parent=1 // pred_fallthru
      _
    // Predicated region
    $region38: #{tpu_custom_call.1} parent=1 // pred_check
      _
    $region39: #{tpu_custom_call.1} parent=1 // pred_check_branch
      %247 = sbr.rel (0) target = $region41
    $region40: #{tpu_custom_call.1} parent=1 // pred_region
      %248 = dma.done [#allocation10], 256
    $region41: #{tpu_custom_call.1} parent=1 // pred_fallthru
      _
    %249 = vsyncpa [#allocation3], 1
    %250 = vsyncpa [#allocation6], 1
    %251 = vsyncpa [#allocation4], 1
    %252 = vsyncpa [#allocation10], 1

</llo_original>
